<compile_context>
chip_gen: v7x
topology: tpu7x:2x2x1
jax: 0.10.0
libtpu: 0.0.40
codegen_flags: <defaults>
</compile_context>

<pallas_src>
import functools

import jax
import jax.numpy as jnp
from jax.experimental import pallas as pl
from jax.experimental.pallas import tpu as pltpu


_LANE_MULT = 256  # v6e/v7x MXU is 2x256^2; over-padding on v5e (128-wide) is harmless.


def _round_up(x, m):
    return (x + m - 1) // m * m


def _vmem_capacity_bytes():
    try:
        return int(pltpu.get_tpu_info().vmem_capacity_bytes)
    except Exception:
        return 64 << 20  # conservative fallback, legal on every generation


def swiglu_kernel(x_ref, w_ref, b_ref, o_ref, *, beta, tn):
    # x_ref: (tm, n_pad)  w_ref: (n_pad, tn)  b_ref: (1, tn)  o_ref: (tm, tn)
    x = x_ref[...]

    # Linear path: bf16 MXU matmul with f32 accumulation over the full K.
    y = jnp.dot(x.astype(jnp.bfloat16), w_ref[...],
                preferred_element_type=jnp.float32)
    y = y + b_ref[...]

    # Gate path (f32) only needs the x columns matching this output-column tile.
    col0 = pl.multiple_of(pl.program_id(1) * tn, tn)
    xg = x_ref[:, pl.ds(col0, tn)].astype(jnp.float32)

    # sigmoid(z) = 0.5 + 0.5*tanh(0.5*z): one EUP op, exact (no approx recip).
    s = 0.5 + 0.5 * jnp.tanh((0.5 * beta) * xg)

    # x*s + (1-s)*y  ==  y + s*(x - y): one fewer vmul/vsub per element.
    o_ref[...] = (y + s * (xg - y)).astype(o_ref.dtype)


def prepare_swiglu_weights(w, b):
    """PyTorch Linear params (w: (out,in), b: (out,)) -> padded (in,out) bf16
    weight and a (1, n_pad) f32 bias row.  Hoist/cache this outside the
    per-step call path: it is an O(N^2) transpose+pad+cast."""
    n_out, n_in = w.shape
    assert n_out == n_in, "SwiGLU gate requires a square Linear (n_embd -> n_embd)"
    n_pad = _round_up(n_in, _LANE_MULT)
    w_t = jnp.pad(jnp.asarray(w).T,
                  ((0, n_pad - n_in), (0, n_pad - n_out))).astype(jnp.bfloat16)
    b2d = jnp.pad(jnp.asarray(b), (0, n_pad - n_out)).reshape(1, n_pad).astype(jnp.float32)
    return w_t, b2d


def swiglu_prepared(x, w_t, b2d, beta, *, tm=None, tn=None):
    """x: (..., n_embd); w_t/b2d: outputs of prepare_swiglu_weights."""
    orig_shape = x.shape
    n_embd = orig_shape[-1]
    n_pad = w_t.shape[0]
    out_dtype = x.dtype

    x2d = x.reshape(-1, n_embd)
    M = x2d.shape[0]

    vmem_cap = _vmem_capacity_bytes()

    # Per-generation row tile: 256 on 64 MiB/TC parts (v7x), 512 on 128 MiB parts.
    if tm is None:
        tm = 256 if vmem_cap <= (64 << 20) else 512
    row_mult = 16 if x2d.dtype == jnp.bfloat16 else 8
    tm = max(row_mult, min(_round_up(tm, row_mult), _round_up(M, row_mult)))
    m_pad = _round_up(M, tm)

    # Output-column tile: largest multiple of _LANE_MULT that divides n_pad,
    # capped at the target (default 512).
    if tn is None:
        tn = 512
    tn = max(_LANE_MULT, min(_round_up(tn, _LANE_MULT), n_pad))
    while n_pad % tn != 0:
        tn -= _LANE_MULT
    m_grid = m_pad // tm
    n_grid = n_pad // tn

    if (m_pad, n_pad) != (M, n_embd):
        x2d = jnp.pad(x2d, ((0, m_pad - M), (0, n_pad - n_embd)))

    # VMEM working set: double-buffered streamed x / out tiles, plus the weight
    # slab (single-buffered when its index_map is constant, i.e. n_grid == 1).
    x_bytes = jnp.dtype(x2d.dtype).itemsize
    o_bytes = jnp.dtype(out_dtype).itemsize
    w_bufs = 1 if n_grid == 1 else 2
    working_set = (2 * tm * n_pad * x_bytes        # streamed x
                   + w_bufs * n_pad * tn * 2        # bf16 weight slab(s)
                   + w_bufs * tn * 4                # bias
                   + 2 * tm * tn * o_bytes)         # streamed out
    vmem_limit = int(min(0.85 * vmem_cap, max(working_set + (8 << 20), 16 << 20)))

    kernel = functools.partial(swiglu_kernel, beta=float(beta), tn=tn)
    wb_mode = pl.Buffered(1) if n_grid == 1 else None  # resident weight -> 1 buffer

    out = pl.pallas_call(
        kernel,
        out_shape=jax.ShapeDtypeStruct((m_pad, n_pad), out_dtype),
        grid_spec=pltpu.PrefetchScalarGridSpec(
            num_scalar_prefetch=0,
            grid=(m_grid, n_grid),
            in_specs=[
                # x: full-width row tile; constant over the inner column axis,
                # so it is DMA'd once per row tile.
                pl.BlockSpec((tm, n_pad), lambda i, j: (i, 0)),
                # weight: (n_pad, tn) slab streamed along the column axis.
                pl.BlockSpec((n_pad, tn), lambda i, j: (0, j),
                             pipeline_mode=wb_mode),
                # bias: (1, tn) slab streamed along the column axis.
                pl.BlockSpec((1, tn), lambda i, j: (0, j),
                             pipeline_mode=wb_mode),
            ],
            out_specs=pl.BlockSpec((tm, tn), lambda i, j: (i, j)),
        ),
        compiler_params=pltpu.CompilerParams(
            dimension_semantics=("parallel", "parallel"),
            vmem_limit_bytes=vmem_limit,
        ),
    )(x2d, w_t, b2d)

    return out[:M, :n_embd].reshape(orig_shape)


def swiglu(x, w, b, beta, *, tm=None, tn=None):
    """Convenience wrapper. For repeated calls with the same Linear params,
    call prepare_swiglu_weights once, cache the result, and use
    swiglu_prepared directly."""
    w_t, b2d = prepare_swiglu_weights(w, b)
    return swiglu_prepared(x, w_t, b2d, beta, tm=tm, tn=tn)


def swiglu_ref(x, w, b, beta):
    y = x @ w.T + b
    s = jax.nn.sigmoid(beta * x)
    return x * s + (1.0 - s) * y


if __name__ == "__main__":
    batch, seq, n_embd = 2, 8, 32
    beta = 1.5

    key = jax.random.PRNGKey(0)
    kx, kw, kb = jax.random.split(key, 3)
    x = jax.random.normal(kx, (batch, seq, n_embd), dtype=jnp.float32)
    # PyTorch Linear layout: weight (out, in), bias (out,)
    w = jax.random.normal(kw, (n_embd, n_embd), dtype=jnp.float32) * 0.1
    b = jax.random.normal(kb, (n_embd,), dtype=jnp.float32) * 0.1

    out = swiglu(x, w, b, beta)
    out = jax.block_until_ready(out)

    ref = swiglu_ref(x, w, b, beta)
    assert out.shape == x.shape
    # bf16 matmul inputs (f32 accumulation, exact f32 gate) -> modest tolerance.
    assert jnp.allclose(out, ref, atol=2e-2, rtol=2e-2), "mismatch vs reference"

    print("KERNEL_OK")
</pallas_src>

<mosaic_0001>
module attributes {stable_mosaic.version = 11 : i64} {
  func.func @swiglu_kernel(%arg0: i32, %arg1: i32, %arg2: memref<16x256xf32, #tpu.memory_space<vmem>>, %arg3: memref<256x256xbf16, #tpu.memory_space<vmem>>, %arg4: memref<1x256xf32, #tpu.memory_space<vmem>>, %arg5: memref<16x256xf32, #tpu.memory_space<vmem>>) attributes {dimension_semantics = [#tpu.dimension_semantics<parallel>, #tpu.dimension_semantics<parallel>], iteration_bounds = array<i64: 1, 1>, scalar_prefetch = 0 : i64, scratch_operands = 0 : i64, tpu.core_type = #tpu.core_type<tc>, window_params = [{transform_indices = @transform_0, window_bounds = array<i64: 16, 256>}, {pipeline_mode = #tpu.pipeline_mode<synchronous>, transform_indices = @transform_1, window_bounds = array<i64: 256, 256>}, {pipeline_mode = #tpu.pipeline_mode<synchronous>, transform_indices = @transform_2, window_bounds = array<i64: 1, 256>}, {transform_indices = @transform_3, window_bounds = array<i64: 16, 256>}]} {
    %c0 = arith.constant 0 : index
    %c0_0 = arith.constant 0 : index
    %0 = vector.load %arg2[%c0, %c0_0] : memref<16x256xf32, #tpu.memory_space<vmem>>, vector<16x256xf32>
    %1 = arith.truncf %0 : vector<16x256xf32> to vector<16x256xbf16>
    %c0_1 = arith.constant 0 : index
    %c0_2 = arith.constant 0 : index
    %2 = vector.load %arg3[%c0_1, %c0_2] : memref<256x256xbf16, #tpu.memory_space<vmem>>, vector<256x256xbf16>
    %cst = arith.constant dense<0.000000e+00> : vector<16x256xf32>
    %3 = tpu.matmul %1, %2, %cst {dimension_numbers = #tpu.dot_dimension_numbers<[1], [0], [0], [1], [0, 0, 1, 1], [], []>} : vector<16x256xbf16>, vector<256x256xbf16>, vector<16x256xf32> -> vector<16x256xf32>
    %c0_3 = arith.constant 0 : index
    %c0_4 = arith.constant 0 : index
    %4 = vector.load %arg4[%c0_3, %c0_4] : memref<1x256xf32, #tpu.memory_space<vmem>>, vector<1x256xf32>
    %5 = vector.broadcast %4 : vector<1x256xf32> to vector<16x256xf32>
    %6 = arith.addf %3, %5 : vector<16x256xf32>
    %c256_i32 = arith.constant 256 : i32
    %7 = arith.muli %arg1, %c256_i32 : i32
    %8 = tpu.assume_multiple %7, 256 : i32
    %c0_5 = arith.constant 0 : index
    %9 = arith.index_cast %8 : i32 to index
    %10 = vector.load %arg2[%c0_5, %9] : memref<16x256xf32, #tpu.memory_space<vmem>>, vector<16x256xf32>
    %cst_6 = arith.constant 7.500000e-01 : f32
    %11 = vector.broadcast %cst_6 : f32 to vector<16x256xf32>
    %12 = arith.mulf %11, %10 : vector<16x256xf32>
    %13 = math.tanh %12 : vector<16x256xf32>
    %cst_7 = arith.constant 5.000000e-01 : f32
    %14 = vector.broadcast %cst_7 : f32 to vector<16x256xf32>
    %15 = arith.mulf %14, %13 : vector<16x256xf32>
    %cst_8 = arith.constant 5.000000e-01 : f32
    %16 = vector.broadcast %cst_8 : f32 to vector<16x256xf32>
    %17 = arith.addf %16, %15 : vector<16x256xf32>
    %18 = arith.subf %10, %6 : vector<16x256xf32>
    %19 = arith.mulf %17, %18 : vector<16x256xf32>
    %20 = arith.addf %6, %19 : vector<16x256xf32>
    %c0_9 = arith.constant 0 : index
    %c0_10 = arith.constant 0 : index
    %21 = vector.load %arg5[%c0_9, %c0_10] : memref<16x256xf32, #tpu.memory_space<vmem>>, vector<16x256xf32>
    tpu.vector_store %arg5[%c0_9, %c0_10], %20 {strides = array<i32>} : memref<16x256xf32, #tpu.memory_space<vmem>>, vector<16x256xf32>,
    return
  }
  func.func @transform_0(%arg0: i32, %arg1: i32) -> (i32, i32) {
    %c0_i32 = arith.constant 0 : i32
    %c0_i32_0 = arith.constant 0 : i32
    return %arg0, %c0_i32 : i32, i32
  }
  func.func @transform_1(%arg0: i32, %arg1: i32) -> (i32, i32) {
    %c0_i32 = arith.constant 0 : i32
    %c0_i32_0 = arith.constant 0 : i32
    return %c0_i32, %arg1 : i32, i32
  }
  func.func @transform_2(%arg0: i32, %arg1: i32) -> (i32, i32) {
    %c0_i32 = arith.constant 0 : i32
    %c0_i32_0 = arith.constant 0 : i32
    return %c0_i32, %arg1 : i32, i32
  }
  func.func @transform_3(%arg0: i32, %arg1: i32) -> (i32, i32) {
    %c0_i32 = arith.constant 0 : i32
    return %arg0, %arg1 : i32, i32
  }
}

</mosaic_0001>

<llo_original>
// kernel: tpu_custom_call.1
$region0: #{tpu_custom_call.1}
  #allocation0 [shape = 'u32[]', space=smem, size = 0x4, offset = 0x4, fixed_abs, tag = 'smem constant byte address 0x4 - core index']
  #allocation1 [shape = 'u32[144,128]{1,0:T(1,128)}', space=vmem, size = 0x12000, scoped, tag = 'internal scratch']
  %s0 = inlined_call_operand.hbm [shape: f32[16,256], index: 0, kind: input, shape index: {}]
  %s1 = inlined_call_operand.hbm [shape: bf16[256,256], index: 1, kind: input, shape index: {}]
  %s2 = inlined_call_operand.vmem [shape: f32[1,256], index: 2, kind: input, shape index: {}]
  %s3 = inlined_call_operand.hbm [shape: f32[16,256], index: 3, kind: output, shape index: {}]
  %s4 = sld [smem:[#allocation0]]
  $region30: #{tpu_custom_call.1} parent=0
    _
  %s6 = ssub.s32 1, %s4
  %s7 = scalar_select 0, %s6, %s4
  $region1: #{tpu_custom_call.1} parent=0
    #allocation2 [shape = 'u8[16384]{0}', space=vmem, size = 0x4000, scoped, tag = 'input window, operand 0, single buffered']
    #allocation3 [shape = 's32[1]{0}', space=sflag, size = 0x4, scoped, tag = 'scoped memory for tpu_custom_call.1']
    #allocation4 [shape = 's32[1]{0}', space=sflag, size = 0x4, scoped, tag = 'scoped memory for tpu_custom_call.1']
    #allocation5 [shape = 'u8[131072]{0}', space=vmem, size = 0x20000, scoped, tag = 'input window, operand 1, single buffered']
    #allocation6 [shape = 's32[1]{0}', space=sflag, size = 0x4, scoped, tag = 'scoped memory for tpu_custom_call.1']
    #allocation7 [shape = 'u8[16384]{0}', space=vmem, size = 0x4000, scoped, tag = 'output window, operand 0, single buffered']
    %8 = vsyncpa [#allocation3], 0
    %9 = vsyncpa [#allocation6], 0
    %10 = vsyncpa [#allocation4], 0
    // Predicated region
    $region2: #{tpu_custom_call.1} parent=1 // pred_check
      _
    $region3: #{tpu_custom_call.1} parent=1 // pred_check_branch
      %12 = sbr.rel (0) target = $region5
    $region4: #{tpu_custom_call.1} parent=1 // pred_region
      %s14 = ssub.s32 512, 512
      %15 = vsyncadd [#allocation3], %s14
      %s16 = sshll.u32 [#allocation2], 4
      %s17 = int_to_ptr.vmem [resolvable:$true] %s16
      %22 = dma.hbm_to_vmem [thread:$0]  %s0, 512, %s17, [#allocation3], 256, 256, 16
    $region5: #{tpu_custom_call.1} parent=1 // pred_fallthru
      _
    // Predicated region
    $region6: #{tpu_custom_call.1} parent=1 // pred_check
      _
    $region7: #{tpu_custom_call.1} parent=1 // pred_check_branch
      %24 = sbr.rel (0) target = $region9
    $region8: #{tpu_custom_call.1} parent=1 // pred_region
      %s26 = ssub.s32 4096, 4096
      %27 = vsyncadd [#allocation6], %s26
      %s28 = sshll.u32 [#allocation5], 4
      %s29 = int_to_ptr.vmem [resolvable:$true] %s28
      %34 = dma.hbm_to_vmem [thread:$0]  %s1, 4096, %s29, [#allocation6], 128, 128, 8
    $region9: #{tpu_custom_call.1} parent=1 // pred_fallthru
      _
    // Predicated region
    $region10: #{tpu_custom_call.1} parent=1 // pred_check
      _
    $region11: #{tpu_custom_call.1} parent=1 // pred_check_branch
      %36 = sbr.rel (0) target = $region13
    $region12: #{tpu_custom_call.1} parent=1 // pred_region
      _
    $region13: #{tpu_custom_call.1} parent=1 // pred_fallthru
      _
    // Predicated region
    $region14: #{tpu_custom_call.1} parent=1 // pred_check
      _
    $region15: #{tpu_custom_call.1} parent=1 // pred_check_branch
      %38 = sbr.rel (0) target = $region17
    $region16: #{tpu_custom_call.1} parent=1 // pred_region
      %39 = dma.done [#allocation3], 512
    $region17: #{tpu_custom_call.1} parent=1 // pred_fallthru
      _
    // Predicated region
    $region18: #{tpu_custom_call.1} parent=1 // pred_check
      _
    $region19: #{tpu_custom_call.1} parent=1 // pred_check_branch
      %41 = sbr.rel (0) target = $region21
    $region20: #{tpu_custom_call.1} parent=1 // pred_region
      %42 = dma.done [#allocation6], 4096
    $region21: #{tpu_custom_call.1} parent=1 // pred_fallthru
      _
    %v43 = vld [vmem:[#allocation2] sm:$0xff]
    %v44 = vld [vmem:[#allocation2 + $0x8] sm:$0xff]
    %v45 = vld [vmem:[#allocation2 + $0x10] sm:$0xff]
    %v46 = vld [vmem:[#allocation2 + $0x18] sm:$0xff]
    %v47 = vpack.c.bf16 %v45, %v43
    %v48 = vpack.c.bf16 %v46, %v44
    %v49 = vld [vmem:[#allocation5] sm:$0xff]
    %v50 = vld [vmem:[#allocation5 + $0x8] sm:$0xff]
    %v51 = vld [vmem:[#allocation5 + $0x10] sm:$0xff]
    %v52 = vld [vmem:[#allocation5 + $0x18] sm:$0xff]
    %v53 = vld [vmem:[#allocation5 + $0x20] sm:$0xff]
    %v54 = vld [vmem:[#allocation5 + $0x28] sm:$0xff]
    %v55 = vld [vmem:[#allocation5 + $0x30] sm:$0xff]
    %v56 = vld [vmem:[#allocation5 + $0x38] sm:$0xff]
    %v57 = vld [vmem:[#allocation5 + $0x40] sm:$0xff]
    %v58 = vld [vmem:[#allocation5 + $0x48] sm:$0xff]
    %v59 = vld [vmem:[#allocation5 + $0x50] sm:$0xff]
    %v60 = vld [vmem:[#allocation5 + $0x58] sm:$0xff]
    %v61 = vld [vmem:[#allocation5 + $0x60] sm:$0xff]
    %v62 = vld [vmem:[#allocation5 + $0x68] sm:$0xff]
    %v63 = vld [vmem:[#allocation5 + $0x70] sm:$0xff]
    %v64 = vld [vmem:[#allocation5 + $0x78] sm:$0xff]
    %v65 = vld [vmem:[#allocation5 + $0x80] sm:$0xff]
    %v66 = vld [vmem:[#allocation5 + $0x88] sm:$0xff]
    %v67 = vld [vmem:[#allocation5 + $0x90] sm:$0xff]
    %v68 = vld [vmem:[#allocation5 + $0x98] sm:$0xff]
    %v69 = vld [vmem:[#allocation5 + $0xa0] sm:$0xff]
    %v70 = vld [vmem:[#allocation5 + $0xa8] sm:$0xff]
    %v71 = vld [vmem:[#allocation5 + $0xb0] sm:$0xff]
    %v72 = vld [vmem:[#allocation5 + $0xb8] sm:$0xff]
    %v73 = vld [vmem:[#allocation5 + $0xc0] sm:$0xff]
    %v74 = vld [vmem:[#allocation5 + $0xc8] sm:$0xff]
    %v75 = vld [vmem:[#allocation5 + $0xd0] sm:$0xff]
    %v76 = vld [vmem:[#allocation5 + $0xd8] sm:$0xff]
    %v77 = vld [vmem:[#allocation5 + $0xe0] sm:$0xff]
    %v78 = vld [vmem:[#allocation5 + $0xe8] sm:$0xff]
    %v79 = vld [vmem:[#allocation5 + $0xf0] sm:$0xff]
    %v80 = vld [vmem:[#allocation5 + $0xf8] sm:$0xff]
    %v81 = vld [vmem:[%s2] sm:$0x3]
    %v83 = vlaneseq
    %v84 = vshrl.u32 %v83, 7
    %v85 = vsub.s32 0, %v84
    %v86 = vrot.slane %v81, %v85
    %v87 = vlaneseq
    %v88 = vshrl.u32 %v87, 7
    %v89 = vsub.s32 1, %v88
    %v90 = vrot.slane %v81, %v89
    %v125 = vunpack.c.l.b16 %v49
    %v126 = vunpack.c.h.b16 %v49
    %v127 = vunpack.c.l.b16 %v50
    %v128 = vunpack.c.h.b16 %v50
    %v129 = vunpack.c.l.b16 %v51
    %v130 = vunpack.c.h.b16 %v51
    %v131 = vunpack.c.l.b16 %v52
    %v132 = vunpack.c.h.b16 %v52
    %v133 = vunpack.c.l.b16 %v53
    %v134 = vunpack.c.h.b16 %v53
    %v135 = vunpack.c.l.b16 %v54
    %v136 = vunpack.c.h.b16 %v54
    %v137 = vunpack.c.l.b16 %v55
    %v138 = vunpack.c.h.b16 %v55
    %v139 = vunpack.c.l.b16 %v56
    %v140 = vunpack.c.h.b16 %v56
    %v141 = vunpack.c.l.b16 %v57
    %v142 = vunpack.c.h.b16 %v57
    %v143 = vunpack.c.l.b16 %v58
    %v144 = vunpack.c.h.b16 %v58
    %v145 = vunpack.c.l.b16 %v59
    %v146 = vunpack.c.h.b16 %v59
    %v147 = vunpack.c.l.b16 %v60
    %v148 = vunpack.c.h.b16 %v60
    %v149 = vunpack.c.l.b16 %v61
    %v150 = vunpack.c.h.b16 %v61
    %v151 = vunpack.c.l.b16 %v62
    %v152 = vunpack.c.h.b16 %v62
    %v153 = vunpack.c.l.b16 %v63
    %v154 = vunpack.c.h.b16 %v63
    %v155 = vunpack.c.l.b16 %v64
    %v156 = vunpack.c.h.b16 %v64
    %v157 = vunpack.c.l.b16 %v65
    %v158 = vunpack.c.h.b16 %v65
    %v159 = vunpack.c.l.b16 %v66
    %v160 = vunpack.c.h.b16 %v66
    %v161 = vunpack.c.l.b16 %v67
    %v162 = vunpack.c.h.b16 %v67
    %v163 = vunpack.c.l.b16 %v68
    %v164 = vunpack.c.h.b16 %v68
    %v165 = vunpack.c.l.b16 %v69
    %v166 = vunpack.c.h.b16 %v69
    %v167 = vunpack.c.l.b16 %v70
    %v168 = vunpack.c.h.b16 %v70
    %v169 = vunpack.c.l.b16 %v71
    %v170 = vunpack.c.h.b16 %v71
    %v171 = vunpack.c.l.b16 %v72
    %v172 = vunpack.c.h.b16 %v72
    %v173 = vunpack.c.l.b16 %v73
    %v174 = vunpack.c.h.b16 %v73
    %v175 = vunpack.c.l.b16 %v74
    %v176 = vunpack.c.h.b16 %v74
    %v177 = vunpack.c.l.b16 %v75
    %v178 = vunpack.c.h.b16 %v75
    %v179 = vunpack.c.l.b16 %v76
    %v180 = vunpack.c.h.b16 %v76
    %v181 = vunpack.c.l.b16 %v77
    %v182 = vunpack.c.h.b16 %v77
    %v183 = vunpack.c.l.b16 %v78
    %v184 = vunpack.c.h.b16 %v78
    %v185 = vunpack.c.l.b16 %v79
    %v186 = vunpack.c.h.b16 %v79
    %v187 = vunpack.c.l.b16 %v80
    %v188 = vunpack.c.h.b16 %v80
    %v189 = vpack.c.b16 %v127, %v125
    %v190 = vpack.c.b16 %v128, %v126
    %v191 = vpack.c.b16 %v131, %v129
    %v192 = vpack.c.b16 %v132, %v130
    %v193 = vpack.c.b16 %v135, %v133
    %v194 = vpack.c.b16 %v136, %v134
    %v195 = vpack.c.b16 %v139, %v137
    %v196 = vpack.c.b16 %v140, %v138
    %v197 = vpack.c.b16 %v143, %v141
    %v198 = vpack.c.b16 %v144, %v142
    %v199 = vpack.c.b16 %v147, %v145
    %v200 = vpack.c.b16 %v148, %v146
    %v201 = vpack.c.b16 %v151, %v149
    %v202 = vpack.c.b16 %v152, %v150
    %v203 = vpack.c.b16 %v155, %v153
    %v204 = vpack.c.b16 %v156, %v154
    %v205 = vpack.c.b16 %v159, %v157
    %v206 = vpack.c.b16 %v160, %v158
    %v207 = vpack.c.b16 %v163, %v161
    %v208 = vpack.c.b16 %v164, %v162
    %v209 = vpack.c.b16 %v167, %v165
    %v210 = vpack.c.b16 %v168, %v166
    %v211 = vpack.c.b16 %v171, %v169
    %v212 = vpack.c.b16 %v172, %v170
    %v213 = vpack.c.b16 %v175, %v173
    %v214 = vpack.c.b16 %v176, %v174
    %v215 = vpack.c.b16 %v179, %v177
    %v216 = vpack.c.b16 %v180, %v178
    %v217 = vpack.c.b16 %v183, %v181
    %v218 = vpack.c.b16 %v184, %v182
    %v219 = vpack.c.b16 %v187, %v185
    %v220 = vpack.c.b16 %v188, %v186
    %253 = vmatprep.subr.bf16.mxu0 %v190
    %254 = vmatpush1.bf16.msra.mxu0 %v189
    %255 = vmatprep.subr.bf16.mxu0 %v192
    %256 = vmatpush1.bf16.msra.mxu0 %v191
    %257 = vmatprep.subr.bf16.mxu0 %v194
    %258 = vmatpush1.bf16.msra.mxu0 %v193
    %259 = vmatprep.subr.bf16.mxu0 %v196
    %260 = vmatpush1.bf16.msra.mxu0 %v195
    %261 = vmatprep.subr.bf16.mxu0 %v198
    %262 = vmatpush1.bf16.msra.mxu0 %v197
    %263 = vmatprep.subr.bf16.mxu0 %v200
    %264 = vmatpush1.bf16.msra.mxu0 %v199
    %265 = vmatprep.subr.bf16.mxu0 %v202
    %266 = vmatpush1.bf16.msra.mxu0 %v201
    %267 = vmatprep.subr.bf16.mxu0 %v204
    %268 = vmatpush1.bf16.msra.mxu0 %v203
    %269 = vmatprep.subr.bf16.mxu0 %v206
    %270 = vmatpush1.bf16.msra.mxu0 %v205
    %271 = vmatprep.subr.bf16.mxu0 %v208
    %272 = vmatpush1.bf16.msra.mxu0 %v207
    %273 = vmatprep.subr.bf16.mxu0 %v210
    %274 = vmatpush1.bf16.msra.mxu0 %v209
    %275 = vmatprep.subr.bf16.mxu0 %v212
    %276 = vmatpush1.bf16.msra.mxu0 %v211
    %277 = vmatprep.subr.bf16.mxu0 %v214
    %278 = vmatpush1.bf16.msra.mxu0 %v213
    %279 = vmatprep.subr.bf16.mxu0 %v216
    %280 = vmatpush1.bf16.msra.mxu0 %v215
    %281 = vmatprep.subr.bf16.mxu0 %v218
    %282 = vmatpush1.bf16.msra.mxu0 %v217
    %283 = vmatprep.subr.bf16.mxu0 %v220
    %284 = vmatpush1.bf16.msra.mxu0 %v219
    %285 = vmatprep.mubr.bf16.mxu0 %v48
    %286 = vmatmul.mubr.bf16.gmra.mrb[0].mxu0 %v47
    %v287 = vpop.f32.mrb[0].mxu0
    %v288 = vadd.f32 %v86, %v287
    %v289 = vpop.f32.mrb[0].mxu0
    %v290 = vadd.f32 %v90, %v289
    %v291 = vpop.f32.mrb[0].mxu0
    %v292 = vadd.f32 %v86, %v291
    %v293 = vpop.f32.mrb[0].mxu0
    %v294 = vadd.f32 %v90, %v293
    %295 = vdwg.mxu0
    %s296 = smul.u32 0, 256
    %s297 = sshra.s32 %s296, 7
    %s298 = sand.u32 %s296, 127
    %s299 = smul.addr %s297, 8
    %s300 = scalar_lea.vmem [#allocation2], %s299
    %v301 = vld [vmem:[%s300] sm:$0xff]
    %v302 = vld [vmem:[%s300 + $0x8] sm:$0xff]
    %v303 = vld [vmem:[%s300 + $0x10] sm:$0xff]
    %v304 = vld [vmem:[%s300 + $0x18] sm:$0xff]
    %v305 = vmul.f32 %v301, 0.75
    %v306 = vmul.f32 %v302, 0.75
    %v307 = vmul.f32 %v303, 0.75
    %v308 = vmul.f32 %v304, 0.75
    %v309 = vtanh.pop %v305
    %v310 = vtanh.pop %v306
    %v311 = vtanh.pop %v307
    %v312 = vtanh.pop %v308
    %v313 = vmul.f32 %v309, 0.5
    %v314 = vmul.f32 %v310, 0.5
    %v315 = vmul.f32 %v311, 0.5
    %v316 = vmul.f32 %v312, 0.5
    %v317 = vadd.f32 %v313, 0.5
    %v318 = vadd.f32 %v314, 0.5
    %v319 = vadd.f32 %v315, 0.5
    %v320 = vadd.f32 %v316, 0.5
    %v321 = vsub.f32 %v301, %v288
    %v322 = vsub.f32 %v302, %v290
    %v323 = vsub.f32 %v303, %v292
    %v324 = vsub.f32 %v304, %v294
    %v325 = vmul.f32 %v317, %v321
    %v326 = vmul.f32 %v318, %v322
    %v327 = vmul.f32 %v319, %v323
    %v328 = vmul.f32 %v320, %v324
    %v329 = vadd.f32 %v288, %v325
    %v330 = vadd.f32 %v290, %v326
    %v331 = vadd.f32 %v292, %v327
    %v332 = vadd.f32 %v294, %v328
    %333 = vst [vmem:[#allocation7] sm:$0xff] %v329
    %334 = vst [vmem:[#allocation7 + $0x8] sm:$0xff] %v330
    %335 = vst [vmem:[#allocation7 + $0x10] sm:$0xff] %v331
    %336 = vst [vmem:[#allocation7 + $0x18] sm:$0xff] %v332
    // Predicated region
    $region22: #{tpu_custom_call.1} parent=1 // pred_check
      _
    $region23: #{tpu_custom_call.1} parent=1 // pred_check_branch
      %338 = sbr.rel (0) target = $region25
    $region24: #{tpu_custom_call.1} parent=1 // pred_region
      %s340 = ssub.s32 512, 512
      %341 = vsyncadd [#allocation4], %s340
      %s342 = sshll.u32 [#allocation7], 4
      %s343 = int_to_ptr.vmem [resolvable:$true] %s342
      %348 = dma.vmem_to_hbm [thread:$0]  %s343, 512, %s3, [#allocation4], 256, 256, 16
    $region25: #{tpu_custom_call.1} parent=1 // pred_fallthru
      _
    // Predicated region
    $region26: #{tpu_custom_call.1} parent=1 // pred_check
      _
    $region27: #{tpu_custom_call.1} parent=1 // pred_check_branch
      %350 = sbr.rel (0) target = $region29
    $region28: #{tpu_custom_call.1} parent=1 // pred_region
      %351 = dma.done [#allocation4], 512
    $region29: #{tpu_custom_call.1} parent=1 // pred_fallthru
      _
    %352 = vsyncpa [#allocation3], 1
    %353 = vsyncpa [#allocation6], 1
    %354 = vsyncpa [#allocation4], 1

</llo_original>
